<compile_context>
chip_gen: v7x
topology: tpu7x:2x2x1
jax: 0.10.0
libtpu: 0.0.40
codegen_flags: <defaults>
</compile_context>

<pallas_src>
import functools
import math

import jax
import jax.numpy as jnp
from jax.experimental import pallas as pl
from jax.experimental.pallas import tpu as pltpu


def _round_up(x, m):
    return (x + m - 1) // m * m


def _pad_cast(a, shape, dtype):
    """Cast + zero-pad only when needed (no copy for already-aligned inputs)."""
    if a.dtype != dtype:
        a = a.astype(dtype)
    if a.shape != shape:
        a = jnp.pad(a, [(0, t - s) for s, t in zip(a.shape, shape)])
    return a


def gcn_kernel(adj_ref, s_ref, b_ref, o_ref, *, tk, support_resident):
    """One (row-tile i, K-tile k) step of out = adj @ support + bias.

    adj_ref : (TM, TK)                 adjacency tile, block (i, k)  [streamed]
    s_ref   : (Ncols, Fo) or (TK, Fo)  support: resident | block (k, 0)
    b_ref   : (1, Fo)  f32             bias (resident)
    o_ref   : (TM, Fo) f32             output tile, block (i, 0) -- resident
                                       across k, used directly as accumulator.
    """
    k = pl.program_id(1)

    @pl.when(k == 0)
    def _init():
        o_ref[...] = jnp.zeros_like(o_ref)

    if support_resident:
        start = pl.multiple_of(k * tk, tk)
        s = s_ref[pl.ds(start, tk), :]
    else:
        s = s_ref[...]

    # Dominant 2*N^2*Fo FLOPs: MXU dot with f32 accumulation directly into the
    # resident f32 output block (no scratch accumulator, no extra VPU copy).
    o_ref[...] += jnp.dot(adj_ref[...], s, preferred_element_type=jnp.float32)

    # Epilogue: bias add on the last K step only.
    @pl.when(k == pl.num_programs(1) - 1)
    def _bias():
        o_ref[...] += b_ref[...]


def graph_convolution(x, adj, weight, bias=None, *, tile_n=1024,
                      compute_dtype=jnp.bfloat16):
    """Pallas GCN forward: adj @ (x @ weight) + bias.

    x: [N, Fi] f32, adj: [N, N] f32, weight: [Fi, Fo] f32, bias: [Fo] or None.
    Returns [N, Fo] f32.
    """
    N, Fi = x.shape
    Fo = weight.shape[1]
    if bias is None:
        bias = jnp.zeros((Fo,), jnp.float32)

    fo_p = _round_up(Fo, 128)  # lane-dense output (unmasked vst, full MXU lanes)

    # Row ("parallel") tiling: clamp for small graphs (no 8 -> 1024 padding
    # blowup), keep >= 2 row tiles for mid-size N (v7x has 2 TensorCores), and
    # size tm to minimise padding.
    n_row_tiles = pl.cdiv(_round_up(N, 8), tile_n)
    if n_row_tiles == 1 and N >= 512:
        n_row_tiles = 2
    tm = _round_up(pl.cdiv(N, n_row_tiles), 8)
    n_rows_p = tm * n_row_tiles

    # K (adjacency-column / reduction) tiling: adj block's last dim must be a
    # multiple of 128.
    n_k_tiles = pl.cdiv(_round_up(N, 128), tile_n)
    tk = _round_up(pl.cdiv(N, n_k_tiles), 128)
    n_cols_p = tk * n_k_tiles

    # --- support = x @ W hoisted out of the grid (tiny vs the adj dot) ------
    support = jnp.dot(x.astype(compute_dtype), weight.astype(compute_dtype),
                      preferred_element_type=jnp.float32)
    support_p = _pad_cast(support, (n_cols_p, fo_p), compute_dtype)

    adj_p = _pad_cast(adj, (n_rows_p, n_cols_p), compute_dtype)
    b_p = _pad_cast(bias.reshape(1, Fo).astype(jnp.float32), (1, fo_p),
                    jnp.float32)

    # Keep support fully VMEM-resident when small; otherwise stream per K-tile.
    support_bytes = support_p.size * support_p.dtype.itemsize
    support_resident = support_bytes <= 4 * 1024 * 1024
    if support_resident:
        s_spec = pl.BlockSpec((n_cols_p, fo_p), lambda i, k: (0, 0))
    else:
        s_spec = pl.BlockSpec((tk, fo_p), lambda i, k: (k, 0))

    cost = pl.CostEstimate(
        flops=2 * n_rows_p * n_cols_p * fo_p,
        transcendentals=0,
        bytes_accessed=(adj_p.size * adj_p.dtype.itemsize
                        + support_bytes * (1 if support_resident else n_row_tiles)
                        + b_p.size * 4
                        + n_rows_p * fo_p * 4),
    )

    kernel = functools.partial(gcn_kernel, tk=tk,
                               support_resident=support_resident)

    out_p = pl.pallas_call(
        kernel,
        out_shape=jax.ShapeDtypeStruct((n_rows_p, fo_p), jnp.float32),
        grid_spec=pltpu.PrefetchScalarGridSpec(
            num_scalar_prefetch=0,
            grid=(n_row_tiles, n_k_tiles),
            in_specs=[
                pl.BlockSpec((tm, tk), lambda i, k: (i, k)),    # adj (streamed)
                s_spec,                                         # support
                pl.BlockSpec((1, fo_p), lambda i, k: (0, 0)),   # bias (resident)
            ],
            out_specs=pl.BlockSpec((tm, fo_p), lambda i, k: (i, 0)),
        ),
        compiler_params=pltpu.CompilerParams(
            dimension_semantics=("parallel", "arbitrary"),
            vmem_limit_bytes=32 * 1024 * 1024,
        ),
        cost_estimate=cost,
    )(adj_p, support_p, b_p)

    return out_p[:N, :Fo]


def reference_f32(x, adj, weight, bias):
    return adj @ (x @ weight) + bias[None, :]


def reference_bf16(x, adj, weight, bias):
    # Mirrors the kernel's bf16-input / f32-accumulate numerics.
    xb = x.astype(jnp.bfloat16)
    ab = adj.astype(jnp.bfloat16)
    wb = weight.astype(jnp.bfloat16)
    support = jnp.dot(xb, wb, preferred_element_type=jnp.float32)
    out = jnp.dot(ab, support.astype(jnp.bfloat16),
                  preferred_element_type=jnp.float32)
    return out + bias[None, :]


if __name__ == "__main__":
    key = jax.random.PRNGKey(0)
    k_x, k_adj, k_w, k_b = jax.random.split(key, 4)

    # Small shapes implied by the module: N nodes, in_features -> out_features.
    N, in_features, out_features = 8, 16, 32

    # Deterministic parameter init mirroring reset_parameters():
    # uniform(-stdv, stdv) with stdv = 1/sqrt(out_features).
    stdv = 1.0 / math.sqrt(out_features)
    weight = jax.random.uniform(
        k_w, (in_features, out_features), jnp.float32, minval=-stdv, maxval=stdv
    )
    bias = jax.random.uniform(
        k_b, (out_features,), jnp.float32, minval=-stdv, maxval=stdv
    )

    # Inputs: node features and a dense row-normalized adjacency.
    x = jax.random.normal(k_x, (N, in_features), jnp.float32)
    adj_raw = jax.random.uniform(k_adj, (N, N), jnp.float32)
    adj = adj_raw / jnp.sum(adj_raw, axis=1, keepdims=True)

    out = graph_convolution(x, adj, weight, bias)
    out = jax.block_until_ready(out)
    assert out.shape == (N, out_features)

    # Tight check against a reference with matching bf16 numerics.
    ref_b = reference_bf16(x, adj, weight, bias)
    assert jnp.allclose(out, ref_b, atol=1e-2, rtol=1e-2)

    # Loose check against the full-f32 reference (bf16 rounding tolerance).
    ref_f = reference_f32(x, adj, weight, bias)
    assert jnp.allclose(out, ref_f, atol=3e-2, rtol=3e-2)

    print("KERNEL_OK")
</pallas_src>

<mosaic_0001>
module attributes {stable_mosaic.version = 11 : i64} {
  func.func @gcn_kernel(%arg0: i32, %arg1: i32, %arg2: memref<8x128xbf16, #tpu.memory_space<vmem>>, %arg3: memref<128x128xbf16, #tpu.memory_space<vmem>>, %arg4: memref<1x128xf32, #tpu.memory_space<vmem>>, %arg5: memref<8x128xf32, #tpu.memory_space<vmem>>) attributes {dimension_semantics = [#tpu.dimension_semantics<parallel>, #tpu.dimension_semantics<arbitrary>], iteration_bounds = array<i64: 1, 1>, scalar_prefetch = 0 : i64, scratch_operands = 0 : i64, tpu.core_type = #tpu.core_type<tc>, window_params = [{transform_indices = @transform_0, window_bounds = array<i64: 8, 128>}, {pipeline_mode = #tpu.pipeline_mode<synchronous>, transform_indices = @transform_1, window_bounds = array<i64: 128, 128>}, {pipeline_mode = #tpu.pipeline_mode<synchronous>, transform_indices = @transform_2, window_bounds = array<i64: 1, 128>}, {transform_indices = @transform_3, window_bounds = array<i64: 8, 128>}]} {
    %c0_i32 = arith.constant 0 : i32
    %0 = arith.cmpi eq, %arg1, %c0_i32 : i32
    %1 = arith.extui %0 : i1 to i32
    %c0_i32_0 = arith.constant 0 : i32
    %2 = arith.cmpi ne, %1, %c0_i32_0 : i32
    scf.if %2 {
      %cst_9 = arith.constant 0.000000e+00 : f32
      %15 = vector.broadcast %cst_9 : f32 to vector<8x128xf32>
      %c0_10 = arith.constant 0 : index
      %c0_11 = arith.constant 0 : index
      %16 = vector.load %arg5[%c0_10, %c0_11] : memref<8x128xf32, #tpu.memory_space<vmem>>, vector<8x128xf32>
      tpu.vector_store %arg5[%c0_10, %c0_11], %15 {strides = array<i32>} : memref<8x128xf32, #tpu.memory_space<vmem>>, vector<8x128xf32>,
    } else {
    }
    %c128_i32 = arith.constant 128 : i32
    %3 = arith.muli %arg1, %c128_i32 : i32
    %4 = tpu.assume_multiple %3, 128 : i32
    %5 = arith.index_cast %4 : i32 to index
    %c0 = arith.constant 0 : index
    %6 = vector.load %arg3[%5, %c0] : memref<128x128xbf16, #tpu.memory_space<vmem>>, vector<128x128xbf16>
    %c0_1 = arith.constant 0 : index
    %c0_2 = arith.constant 0 : index
    %7 = vector.load %arg5[%c0_1, %c0_2] : memref<8x128xf32, #tpu.memory_space<vmem>>, vector<8x128xf32>
    %c0_3 = arith.constant 0 : index
    %c0_4 = arith.constant 0 : index
    %8 = vector.load %arg2[%c0_3, %c0_4] : memref<8x128xbf16, #tpu.memory_space<vmem>>, vector<8x128xbf16>
    %cst = arith.constant dense<0.000000e+00> : vector<8x128xf32>
    %9 = tpu.matmul %8, %6, %cst {dimension_numbers = #tpu.dot_dimension_numbers<[1], [0], [0], [1], [0, 0, 1, 1], [], []>} : vector<8x128xbf16>, vector<128x128xbf16>, vector<8x128xf32> -> vector<8x128xf32>
    %10 = arith.addf %7, %9 : vector<8x128xf32>
    %c0_5 = arith.constant 0 : index
    %c0_6 = arith.constant 0 : index
    %11 = vector.load %arg5[%c0_5, %c0_6] : memref<8x128xf32, #tpu.memory_space<vmem>>, vector<8x128xf32>
    tpu.vector_store %arg5[%c0_5, %c0_6], %10 {strides = array<i32>} : memref<8x128xf32, #tpu.memory_space<vmem>>, vector<8x128xf32>,
    %c0_i32_7 = arith.constant 0 : i32
    %12 = arith.cmpi eq, %arg1, %c0_i32_7 : i32
    %13 = arith.extui %12 : i1 to i32
    %c0_i32_8 = arith.constant 0 : i32
    %14 = arith.cmpi ne, %13, %c0_i32_8 : i32
    scf.if %14 {
      %c0_9 = arith.constant 0 : index
      %c0_10 = arith.constant 0 : index
      %15 = vector.load %arg5[%c0_9, %c0_10] : memref<8x128xf32, #tpu.memory_space<vmem>>, vector<8x128xf32>
      %c0_11 = arith.constant 0 : index
      %c0_12 = arith.constant 0 : index
      %16 = vector.load %arg4[%c0_11, %c0_12] : memref<1x128xf32, #tpu.memory_space<vmem>>, vector<1x128xf32>
      %17 = vector.broadcast %16 : vector<1x128xf32> to vector<8x128xf32>
      %18 = arith.addf %15, %17 : vector<8x128xf32>
      %c0_13 = arith.constant 0 : index
      %c0_14 = arith.constant 0 : index
      %19 = vector.load %arg5[%c0_13, %c0_14] : memref<8x128xf32, #tpu.memory_space<vmem>>, vector<8x128xf32>
      tpu.vector_store %arg5[%c0_13, %c0_14], %18 {strides = array<i32>} : memref<8x128xf32, #tpu.memory_space<vmem>>, vector<8x128xf32>,
    } else {
    }
    return
  }
  func.func @transform_0(%arg0: i32, %arg1: i32) -> (i32, i32) {
    %c0_i32 = arith.constant 0 : i32
    return %arg0, %arg1 : i32, i32
  }
  func.func @transform_1(%arg0: i32, %arg1: i32) -> (i32, i32) {
    %c0_i32 = arith.constant 0 : i32
    %c0_i32_0 = arith.constant 0 : i32
    %c0_i32_1 = arith.constant 0 : i32
    return %c0_i32, %c0_i32_0 : i32, i32
  }
  func.func @transform_2(%arg0: i32, %arg1: i32) -> (i32, i32) {
    %c0_i32 = arith.constant 0 : i32
    %c0_i32_0 = arith.constant 0 : i32
    %c0_i32_1 = arith.constant 0 : i32
    return %c0_i32, %c0_i32_0 : i32, i32
  }
  func.func @transform_3(%arg0: i32, %arg1: i32) -> (i32, i32) {
    %c0_i32 = arith.constant 0 : i32
    %c0_i32_0 = arith.constant 0 : i32
    return %arg0, %c0_i32 : i32, i32
  }
}

</mosaic_0001>

<llo_original>
// kernel: tpu_custom_call.1
$region0: #{tpu_custom_call.1}
  #allocation0 [shape = 'u32[]', space=smem, size = 0x4, offset = 0x4, fixed_abs, tag = 'smem constant byte address 0x4 - core index']
  #allocation1 [shape = 'u32[144,128]{1,0:T(1,128)}', space=vmem, size = 0x12000, scoped, tag = 'internal scratch']
  %s0 = inlined_call_operand.hbm [shape: bf16[8,128], index: 0, kind: input, shape index: {}]
  %s1 = inlined_call_operand.hbm [shape: bf16[128,128], index: 1, kind: input, shape index: {}]
  %s2 = inlined_call_operand.vmem [shape: f32[1,128], index: 2, kind: input, shape index: {}]
  %s3 = inlined_call_operand.hbm [shape: f32[8,128], index: 3, kind: output, shape index: {}]
  %s4 = sld [smem:[#allocation0]]
  $region38: #{tpu_custom_call.1} parent=0
    _
  %s6 = ssub.s32 1, %s4
  %s7 = scalar_select 0, %s6, %s4
  $region1: #{tpu_custom_call.1} parent=0
    #allocation2 [shape = 'u8[2048]{0}', space=vmem, size = 0x800, scoped, tag = 'input window, operand 0, single buffered']
    #allocation3 [shape = 's32[1]{0}', space=sflag, size = 0x4, scoped, tag = 'scoped memory for tpu_custom_call.1']
    #allocation4 [shape = 's32[1]{0}', space=sflag, size = 0x4, scoped, tag = 'scoped memory for tpu_custom_call.1']
    #allocation5 [shape = 'u8[32768]{0}', space=vmem, size = 0x8000, scoped, tag = 'input window, operand 1, single buffered']
    #allocation6 [shape = 's32[1]{0}', space=sflag, size = 0x4, scoped, tag = 'scoped memory for tpu_custom_call.1']
    #allocation7 [shape = 'u8[4096]{0}', space=vmem, size = 0x1000, scoped, tag = 'output window, operand 0, single buffered']
    %8 = vsyncpa [#allocation3], 0
    %9 = vsyncpa [#allocation6], 0
    %10 = vsyncpa [#allocation4], 0
    // Predicated region
    $region2: #{tpu_custom_call.1} parent=1 // pred_check
      _
    $region3: #{tpu_custom_call.1} parent=1 // pred_check_branch
      %12 = sbr.rel (0) target = $region5
    $region4: #{tpu_custom_call.1} parent=1 // pred_region
      %s14 = ssub.s32 64, 64
      %15 = vsyncadd [#allocation3], %s14
      %s17 = sshll.u32 [#allocation2], 4
      %s18 = int_to_ptr.vmem [resolvable:$true] %s17
      %20 = dma.hbm_to_vmem [thread:$0]  %s0, 64, %s18, [#allocation3]
    $region5: #{tpu_custom_call.1} parent=1 // pred_fallthru
      _
    // Predicated region
    $region6: #{tpu_custom_call.1} parent=1 // pred_check
      _
    $region7: #{tpu_custom_call.1} parent=1 // pred_check_branch
      %22 = sbr.rel (0) target = $region9
    $region8: #{tpu_custom_call.1} parent=1 // pred_region
      %s24 = ssub.s32 1024, 1024
      %25 = vsyncadd [#allocation6], %s24
      %s26 = sshll.u32 [#allocation5], 4
      %s27 = int_to_ptr.vmem [resolvable:$true] %s26
      %32 = dma.hbm_to_vmem [thread:$0]  %s1, 1024, %s27, [#allocation6], 64, 64, 4
    $region9: #{tpu_custom_call.1} parent=1 // pred_fallthru
      _
    // Predicated region
    $region10: #{tpu_custom_call.1} parent=1 // pred_check
      _
    $region11: #{tpu_custom_call.1} parent=1 // pred_check_branch
      %34 = sbr.rel (0) target = $region13
    $region12: #{tpu_custom_call.1} parent=1 // pred_region
      _
    $region13: #{tpu_custom_call.1} parent=1 // pred_fallthru
      _
    // Predicated region
    $region14: #{tpu_custom_call.1} parent=1 // pred_check
      _
    $region15: #{tpu_custom_call.1} parent=1 // pred_check_branch
      %36 = sbr.rel (0) target = $region17
    $region16: #{tpu_custom_call.1} parent=1 // pred_region
      %37 = dma.done [#allocation3], 64
    $region17: #{tpu_custom_call.1} parent=1 // pred_fallthru
      _
    // Predicated region
    $region18: #{tpu_custom_call.1} parent=1 // pred_check
      _
    $region19: #{tpu_custom_call.1} parent=1 // pred_check_branch
      %39 = sbr.rel (0) target = $region21
    $region20: #{tpu_custom_call.1} parent=1 // pred_region
      %40 = dma.done [#allocation6], 1024
    $region21: #{tpu_custom_call.1} parent=1 // pred_fallthru
      _
    %p42 = scmp.eq.s32.totalorder 0, 0
    // Predicated region
    $region22: #{tpu_custom_call.1} parent=1 // pred_check
      %p43 = pneg %p42
    $region23: #{tpu_custom_call.1} parent=1 // pred_check_branch
      %45 = sbr.rel (%p43) target = $region25
    $region24: #{tpu_custom_call.1} parent=1 // pred_region
      %46 = vst [vmem:[#allocation7] sm:$0xff] 0.0
    $region25: #{tpu_custom_call.1} parent=1 // pred_fallthru
      _
    %s47 = smul.u32 0, 128
    %s48 = sshra.s32 %s47, 3
    %s49 = sand.u32 %s47, 7
    %s50 = smul.addr %s48, 4
    %s51 = scalar_lea.vmem [#allocation5], %s50
    %v52 = vld [vmem:[%s51] sm:$0xf]
    %v53 = vld [vmem:[%s51 + $0x4] sm:$0xf]
    %v54 = vld [vmem:[%s51 + $0x8] sm:$0xf]
    %v55 = vld [vmem:[%s51 + $0xc] sm:$0xf]
    %v56 = vld [vmem:[%s51 + $0x10] sm:$0xf]
    %v57 = vld [vmem:[%s51 + $0x14] sm:$0xf]
    %v58 = vld [vmem:[%s51 + $0x18] sm:$0xf]
    %v59 = vld [vmem:[%s51 + $0x1c] sm:$0xf]
    %v60 = vld [vmem:[%s51 + $0x20] sm:$0xf]
    %v61 = vld [vmem:[%s51 + $0x24] sm:$0xf]
    %v62 = vld [vmem:[%s51 + $0x28] sm:$0xf]
    %v63 = vld [vmem:[%s51 + $0x2c] sm:$0xf]
    %v64 = vld [vmem:[%s51 + $0x30] sm:$0xf]
    %v65 = vld [vmem:[%s51 + $0x34] sm:$0xf]
    %v66 = vld [vmem:[%s51 + $0x38] sm:$0xf]
    %v67 = vld [vmem:[%s51 + $0x3c] sm:$0xf]
    %v68 = vld [vmem:[#allocation7] sm:$0xff]
    %v69 = vld [vmem:[#allocation2] sm:$0xf]
    %v86 = vunpack.c.l.b16 %v52
    %v87 = vunpack.c.l.b16 %v53
    %v88 = vunpack.c.l.b16 %v54
    %v89 = vunpack.c.l.b16 %v55
    %v90 = vunpack.c.l.b16 %v56
    %v91 = vunpack.c.l.b16 %v57
    %v92 = vunpack.c.l.b16 %v58
    %v93 = vunpack.c.l.b16 %v59
    %v94 = vunpack.c.l.b16 %v60
    %v95 = vunpack.c.l.b16 %v61
    %v96 = vunpack.c.l.b16 %v62
    %v97 = vunpack.c.l.b16 %v63
    %v98 = vunpack.c.l.b16 %v64
    %v99 = vunpack.c.l.b16 %v65
    %v100 = vunpack.c.l.b16 %v66
    %v101 = vunpack.c.l.b16 %v67
    %v102 = vpack.c.b16 %v87, %v86
    %v103 = vpack.c.b16 %v89, %v88
    %v104 = vpack.c.b16 %v91, %v90
    %v105 = vpack.c.b16 %v93, %v92
    %v106 = vpack.c.b16 %v95, %v94
    %v107 = vpack.c.b16 %v97, %v96
    %v108 = vpack.c.b16 %v99, %v98
    %v109 = vpack.c.b16 %v101, %v100
    %118 = vmatprep.subr.bf16.mxu0 0
    %119 = vmatpush1.bf16.msra.mxu0 %v102
    %120 = vmatprep.subr.bf16.mxu0 0
    %121 = vmatpush1.bf16.msra.mxu0 %v103
    %122 = vmatprep.subr.bf16.mxu0 0
    %123 = vmatpush1.bf16.msra.mxu0 %v104
    %124 = vmatprep.subr.bf16.mxu0 0
    %125 = vmatpush1.bf16.msra.mxu0 %v105
    %126 = vmatprep.subr.bf16.mxu0 0
    %127 = vmatpush1.bf16.msra.mxu0 %v106
    %128 = vmatprep.subr.bf16.mxu0 0
    %129 = vmatpush1.bf16.msra.mxu0 %v107
    %130 = vmatprep.subr.bf16.mxu0 0
    %131 = vmatpush1.bf16.msra.mxu0 %v108
    %132 = vmatprep.subr.bf16.mxu0 0
    %133 = vmatpush1.bf16.msra.mxu0 %v109
    %134 = vmatprep.subr.bf16.mxu0 0
    %135 = vmatpush1.bf16.msra.mxu0 0
    %136 = vmatprep.subr.bf16.mxu0 0
    %137 = vmatpush1.bf16.msra.mxu0 0
    %138 = vmatprep.subr.bf16.mxu0 0
    %139 = vmatpush1.bf16.msra.mxu0 0
    %140 = vmatprep.subr.bf16.mxu0 0
    %141 = vmatpush1.bf16.msra.mxu0 0
    %142 = vmatprep.subr.bf16.mxu0 0
    %143 = vmatpush1.bf16.msra.mxu0 0
    %144 = vmatprep.subr.bf16.mxu0 0
    %145 = vmatpush1.bf16.msra.mxu0 0
    %146 = vmatprep.subr.bf16.mxu0 0
    %147 = vmatpush1.bf16.msra.mxu0 0
    %148 = vmatprep.subr.bf16.mxu0 0
    %149 = vmatpush1.bf16.msra.mxu0 0
    %150 = vmatprep.mubr.bf16.mxu0 0
    %151 = vmatmul.mubr.bf16.gmra.mrb[0].mxu0 %v69
    %v152 = vpop.f32.mrb[0].mxu0
    %v153 = vadd.f32 0.0, %v152
    %v154 = vpop.f32.mrb[0].mxu0
    %v155 = vpop.f32.mrb[0].mxu0
    %v156 = vpop.f32.mrb[0].mxu0
    %157 = vdwg.mxu0
    %v158 = vadd.f32 %v68, %v153
    %159 = vst [vmem:[#allocation7] sm:$0xff] %v158
    // Predicated region
    $region26: #{tpu_custom_call.1} parent=1 // pred_check
      %p160 = pneg %p42
    $region27: #{tpu_custom_call.1} parent=1 // pred_check_branch
      %162 = sbr.rel (%p160) target = $region29
    $region28: #{tpu_custom_call.1} parent=1 // pred_region
      %v163 = vld [vmem:[#allocation7] sm:$0xff]
      %v164 = vld [vmem:[%s2] sm:$0x1]
      %v166 = vlaneseq
      %v167 = vshrl.u32 %v166, 7
      %v168 = vsub.s32 0, %v167
      %v169 = vrot.slane %v164, %v168
      %v171 = vadd.f32 %v163, %v169
      %172 = vst [vmem:[#allocation7] sm:$0xff] %v171
    $region29: #{tpu_custom_call.1} parent=1 // pred_fallthru
      _
    // Predicated region
    $region30: #{tpu_custom_call.1} parent=1 // pred_check
      _
    $region31: #{tpu_custom_call.1} parent=1 // pred_check_branch
      %174 = sbr.rel (0) target = $region33
    $region32: #{tpu_custom_call.1} parent=1 // pred_region
      %s176 = ssub.s32 128, 128
      %177 = vsyncadd [#allocation4], %s176
      %s179 = sshll.u32 [#allocation7], 4
      %s180 = int_to_ptr.vmem [resolvable:$true] %s179
      %182 = dma.vmem_to_hbm [thread:$0]  %s180, 128, %s3, [#allocation4]
    $region33: #{tpu_custom_call.1} parent=1 // pred_fallthru
      _
    // Predicated region
    $region34: #{tpu_custom_call.1} parent=1 // pred_check
      _
    $region35: #{tpu_custom_call.1} parent=1 // pred_check_branch
      %184 = sbr.rel (0) target = $region37
    $region36: #{tpu_custom_call.1} parent=1 // pred_region
      %185 = dma.done [#allocation4], 128
    $region37: #{tpu_custom_call.1} parent=1 // pred_fallthru
      _
    %186 = vsyncpa [#allocation3], 1
    %187 = vsyncpa [#allocation6], 1
    %188 = vsyncpa [#allocation4], 1

</llo_original>
